<compile_context>
chip_gen: v6e
topology: v6e:2x2x1
jax: 0.10.0
libtpu: 0.0.40
codegen_flags: <defaults>
</compile_context>

<pallas_src>
import numpy as np

import jax
import jax.numpy as jnp
from jax.experimental import pallas as pl
from jax.experimental.pallas import tpu as pltpu


# ----------------------------------------------------------------------------
# table construction (module "buffers"), mirrors the PyTorch __init__ exactly
# ----------------------------------------------------------------------------
def _rope_angles(shape, base=10000.0):
    channel_dims = tuple(int(d) for d in shape[:-1])
    feature_dim = int(shape[-1])
    k_max = feature_dim // (2 * len(channel_dims))
    assert feature_dim % k_max == 0                         # module's assert
    assert 2 * len(channel_dims) * k_max == feature_dim
    theta = 1.0 / base ** (np.arange(k_max, dtype=np.float64) / k_max)
    grids = np.meshgrid(*[np.arange(d, dtype=np.float64) for d in channel_dims],
                        indexing="ij")
    angles = np.concatenate([g[..., None] * theta for g in grids], axis=-1)
    return angles.reshape(-1, feature_dim // 2)             # (N, C//2) float64


def _rope_tables(shape, base=10000.0):
    """Full lane-width (N, C) cos / signed-sin tables (no strided access in-kernel)."""
    c = int(shape[-1])
    ang = _rope_angles(shape, base)
    cos, sin = np.cos(ang), np.sin(ang)
    n = ang.shape[0]
    cos_full = np.empty((n, c), np.float64)
    sin_full = np.empty((n, c), np.float64)
    cos_full[:, 0::2] = cos
    cos_full[:, 1::2] = cos
    sin_full[:, 0::2] = -sin     # multiplies partner x[2k+1] at even output lanes
    sin_full[:, 1::2] = sin      # multiplies partner x[2k]   at odd  output lanes
    return jnp.asarray(cos_full, jnp.float32), jnp.asarray(sin_full, jnp.float32)


# ----------------------------------------------------------------------------
# Pallas kernel
# ----------------------------------------------------------------------------
def _rope_kernel(x_ref, cos_ref, sin_ref, o_ref):
    x = x_ref[...]                                 # (TN, C) lane-dense tile
    c = x.shape[-1]
    # pair partner x[i ^ 1], built from two XLU lane rotations + parity select.
    # (wrap-around lanes are never selected since C is even)
    nxt = pltpu.roll(x, shift=c - 1, axis=1)       # x[(i + 1) % c]
    prv = pltpu.roll(x, shift=1, axis=1)           # x[(i - 1) % c]
    lane = jax.lax.broadcasted_iota(jnp.int32, x.shape, 1)
    partner = jnp.where((lane & 1) == 0, nxt, prv)          # x[i ^ 1]
    out = x * cos_ref[...] + partner * sin_ref[...]
    o_ref[...] = out.astype(o_ref.dtype)


# ----------------------------------------------------------------------------
# tiling / VMEM sizing (generation aware)
# ----------------------------------------------------------------------------
def _vmem_capacity_bytes():
    try:
        info = pltpu.get_tpu_info()
        v = getattr(info, "vmem_capacity_bytes", None)
        if v:
            return int(v)
    except Exception:
        pass
    return 64 * 1024 * 1024        # conservative default (v7x per-TC VMEM)


def _choose_token_tile(n, c, batch, x_itemsize):
    # Largest token tile that (a) divides N, (b) keeps the sublane dim a
    # multiple of 8 (or the full dim), (c) fits a generation-aware VMEM budget
    # with x/out charged at their real dtype and f32 tables charged separately
    # (everything double-buffered), (d) is capped at 2048 rows (tiles past ~512
    # rows buy nothing at the HBM roofline), preferring tiles that leave >= 4
    # total grid steps so both v7x TensorCores get balanced work.
    budget = min(_vmem_capacity_bytes() // 2, 64 * 1024 * 1024)

    io_bytes_per_row = 2 * c * x_itemsize      # x + out rows
    tbl_bytes_per_row = 2 * c * 4              # cos + sin rows (f32)

    def fits(t):                               # 2-deep pipeline on every operand
        return t * (2 * io_bytes_per_row + 2 * tbl_bytes_per_row) <= budget

    cap = min(n, 2048)

    def key(t):                                # prefer >=4 total steps, then size
        steps = batch * (n // t)
        return (steps >= 4, t)

    best = None
    for t in range(1, n + 1):
        if n % t != 0 or not (t % 8 == 0 or t == n) or t > cap or not fits(t):
            continue
        if best is None or key(t) > key(best):
            best = t
    if best is not None:
        return best
    return 8 if n % 8 == 0 else n              # degenerate fallback


# ----------------------------------------------------------------------------
# pallas_call wrapper
# ----------------------------------------------------------------------------
def _rope_pallas(x, cos_full, sin_full):
    b, n, c = x.shape
    isz = jnp.dtype(x.dtype).itemsize
    tn = _choose_token_tile(n, c, b, isz)

    # Grid: (token-tiles, batch) — batch is the INNER (fastest) axis so the
    # cos/sin block index (which only depends on the outer axis) is unchanged
    # across the batch loop and Pallas skips re-fetching the table blocks.
    grid = (n // tn, b)

    x_spec = pl.BlockSpec((None, tn, c), lambda j, i: (i, j, 0))   # batch dim squeezed
    t_spec = pl.BlockSpec((tn, c), lambda j, i: (j, 0))            # outer-axis only

    vmem_limit = max(32 * 1024 * 1024,
                     min(_vmem_capacity_bytes() * 3 // 4, 96 * 1024 * 1024))

    cost = pl.CostEstimate(
        flops=4 * b * n * c,
        transcendentals=0,
        bytes_accessed=2 * b * n * c * isz + 2 * n * c * 4,   # post-hoist traffic
    )

    return pl.pallas_call(
        _rope_kernel,
        out_shape=jax.ShapeDtypeStruct((b, n, c), x.dtype),
        grid=grid,
        in_specs=[x_spec, t_spec, t_spec],
        out_specs=x_spec,
        input_output_aliases={0: 0},           # rotate in place (specs identical)
        compiler_params=pltpu.CompilerParams(
            dimension_semantics=("parallel", "parallel"),
            vmem_limit_bytes=int(vmem_limit),
        ),
        cost_estimate=cost,
    )(x, cos_full, sin_full)


# ----------------------------------------------------------------------------
# module-like wrapper (precomputes the rotation buffers once)
# ----------------------------------------------------------------------------
class RoPE:
    """Rotary positional embedding over a (*spatial, C) grid, Pallas-TPU forward."""

    def __init__(self, shape, base=10000.0):
        self.spatial = tuple(int(d) for d in shape[:-1])
        self.c = int(shape[-1])
        self.n = int(np.prod(self.spatial))
        self.cos_full, self.sin_full = _rope_tables(shape, base)   # (N, C) each

    def __call__(self, x):
        k = x.ndim - len(self.spatial) - 1
        assert x.shape[k:] == (*self.spatial, self.c), "trailing dims must match RoPE shape"
        lead = x.shape[:k]
        b = int(np.prod(lead)) if lead else 1
        xf = x.reshape(b, self.n, self.c)            # contiguous reshape, no transpose
        out = _rope_pallas(xf, self.cos_full, self.sin_full)
        return out.reshape(x.shape)


# ----------------------------------------------------------------------------
# pure-NumPy reference (mirrors the PyTorch forward in float64)
# ----------------------------------------------------------------------------
def rope_reference(x, shape, base=10000.0):
    spatial, c = tuple(shape[:-1]), int(shape[-1])
    n = int(np.prod(spatial))
    angles = _rope_angles(shape, base)
    rot = np.cos(angles) + 1j * np.sin(angles)              # (N, C//2)
    lead = x.shape[:x.ndim - len(shape)]
    xv = np.asarray(x, np.float64).reshape(*lead, n, c // 2, 2)
    xc = xv[..., 0] + 1j * xv[..., 1]
    pe = rot * xc
    out = np.stack([pe.real, pe.imag], axis=-1)
    return out.reshape(*lead, *spatial, c).astype(np.float32)


# ----------------------------------------------------------------------------
if __name__ == "__main__":
    # small LGViT-style feature map: batch=2, 16x16 tokens, feature dim 128
    # (lane-dense last dim; RoPE needs C % (2 * num_spatial_dims) == 0)
    B, H, W, C = 2, 16, 16, 128
    shape = (H, W, C)

    key = jax.random.PRNGKey(0)
    x = jax.random.normal(key, (B, H, W, C), dtype=jnp.float32)

    # snapshot BEFORE the call: the kernel may alias/donate x's buffer in place
    x_np = np.asarray(x)

    rope = RoPE(shape)
    y = jax.block_until_ready(rope(x))

    ref = rope_reference(x_np, shape)
    assert y.shape == (B, H, W, C)
    y_np = np.asarray(y)
    assert np.all(np.isfinite(y_np))
    np.testing.assert_allclose(y_np, ref, rtol=2e-5, atol=2e-5)
    print("KERNEL_OK")
</pallas_src>

<mosaic_0001>
module attributes {stable_mosaic.version = 11 : i64} {
  func.func @_rope_kernel(%arg0: i32, %arg1: i32, %arg2: memref<1x128x128xf32, #tpu.memory_space<vmem>>, %arg3: memref<128x128xf32, #tpu.memory_space<vmem>>, %arg4: memref<128x128xf32, #tpu.memory_space<vmem>>, %arg5: memref<1x128x128xf32, #tpu.memory_space<vmem>>) attributes {dimension_semantics = [#tpu.dimension_semantics<parallel>, #tpu.dimension_semantics<parallel>], iteration_bounds = array<i64: 2, 2>, scalar_prefetch = 0 : i64, scratch_operands = 0 : i64, tpu.core_type = #tpu.core_type<tc>, window_params = [{transform_indices = @transform_0, window_bounds = array<i64: 1, 128, 128>}, {transform_indices = @transform_1, window_bounds = array<i64: 128, 128>}, {transform_indices = @transform_2, window_bounds = array<i64: 128, 128>}, {transform_indices = @transform_3, window_bounds = array<i64: 1, 128, 128>}]} {
    %c0 = arith.constant 0 : index
    %c0_0 = arith.constant 0 : index
    %c0_1 = arith.constant 0 : index
    %0 = vector.load %arg2[%c0, %c0_0, %c0_1] : memref<1x128x128xf32, #tpu.memory_space<vmem>>, vector<1x128x128xf32>
    %1 = vector.shape_cast %0 : vector<1x128x128xf32> to vector<128x128xf32>
    %c127_i32 = arith.constant 127 : i32
    %2 = tpu.dynamic_rotate %1 by %c127_i32 dim 1 : vector<128x128xf32>, i32 -> vector<128x128xf32>
    %c1_i32 = arith.constant 1 : i32
    %3 = tpu.dynamic_rotate %1 by %c1_i32 dim 1 : vector<128x128xf32>, i32 -> vector<128x128xf32>
    %4 = tpu.iota {dimensions = array<i32: 1>} : vector<128x128xi32>
    %c1_i32_2 = arith.constant 1 : i32
    %5 = vector.broadcast %c1_i32_2 : i32 to vector<128x128xi32>
    %6 = arith.andi %4, %5 : vector<128x128xi32>
    %c0_i32 = arith.constant 0 : i32
    %7 = vector.broadcast %c0_i32 : i32 to vector<128x128xi32>
    %8 = arith.cmpi eq, %6, %7 : vector<128x128xi32>
    %9 = arith.select %8, %2, %3 : vector<128x128xi1>, vector<128x128xf32>
    %c0_3 = arith.constant 0 : index
    %c0_4 = arith.constant 0 : index
    %10 = vector.load %arg3[%c0_3, %c0_4] : memref<128x128xf32, #tpu.memory_space<vmem>>, vector<128x128xf32>
    %11 = arith.mulf %1, %10 : vector<128x128xf32>
    %c0_5 = arith.constant 0 : index
    %c0_6 = arith.constant 0 : index
    %12 = vector.load %arg4[%c0_5, %c0_6] : memref<128x128xf32, #tpu.memory_space<vmem>>, vector<128x128xf32>
    %13 = arith.mulf %9, %12 : vector<128x128xf32>
    %14 = arith.addf %11, %13 : vector<128x128xf32>
    %c0_7 = arith.constant 0 : index
    %c0_8 = arith.constant 0 : index
    %c0_9 = arith.constant 0 : index
    %15 = vector.load %arg5[%c0_7, %c0_8, %c0_9] : memref<1x128x128xf32, #tpu.memory_space<vmem>>, vector<1x128x128xf32>
    %16 = vector.shape_cast %15 : vector<1x128x128xf32> to vector<128x128xf32>
    %17 = vector.shape_cast %14 : vector<128x128xf32> to vector<1x128x128xf32>
    tpu.vector_store %arg5[%c0_7, %c0_8, %c0_9], %17 {strides = array<i32>} : memref<1x128x128xf32, #tpu.memory_space<vmem>>, vector<1x128x128xf32>,
    return
  }
  func.func @transform_0(%arg0: i32, %arg1: i32) -> (i32, i32, i32) {
    %c0_i32 = arith.constant 0 : i32
    %c0_i32_0 = arith.constant 0 : i32
    return %arg1, %arg0, %c0_i32 : i32, i32, i32
  }
  func.func @transform_1(%arg0: i32, %arg1: i32) -> (i32, i32) {
    %c0_i32 = arith.constant 0 : i32
    %c0_i32_0 = arith.constant 0 : i32
    return %arg0, %c0_i32 : i32, i32
  }
  func.func @transform_2(%arg0: i32, %arg1: i32) -> (i32, i32) {
    %c0_i32 = arith.constant 0 : i32
    %c0_i32_0 = arith.constant 0 : i32
    return %arg0, %c0_i32 : i32, i32
  }
  func.func @transform_3(%arg0: i32, %arg1: i32) -> (i32, i32, i32) {
    %c0_i32 = arith.constant 0 : i32
    %c0_i32_0 = arith.constant 0 : i32
    return %arg1, %arg0, %c0_i32 : i32, i32, i32
  }
}

</mosaic_0001>

<llo_original>
// kernel: tpu_custom_call.1
$region0: #{tpu_custom_call.1}
  #allocation0 [shape = 'u32[]', space=smem, size = 0x4, offset = 0x4, fixed_abs, tag = 'smem constant byte address 0x4 - core index']
  #allocation1 [shape = 'u32[144,128]{1,0:T(1,128)}', space=vmem, size = 0x12000, scoped, tag = 'internal scratch']
  %s0 = inlined_call_operand.hbm [shape: f32[2,256,128], index: 0, kind: input, shape index: {}, may-alias: {0,3}]
  %s1 = inlined_call_operand.vmem [shape: f32[256,128], index: 1, kind: input, shape index: {}]
  %s2 = inlined_call_operand.vmem [shape: f32[256,128], index: 2, kind: input, shape index: {}]
  %s3 = inlined_call_operand.hbm [shape: f32[2,256,128], index: 3, kind: output, shape index: {}, may-alias: {0,3}]
  %s4 = sld [smem:[#allocation0]]
  $region49: #{tpu_custom_call.1} parent=0
    _
  %s6 = ssub.s32 1, %s4
  %s7 = scalar_select 0, %s6, %s4
  $region1: #{tpu_custom_call.1} parent=0
    #allocation2 [shape = 'u8[131072]{0}', space=vmem, size = 0x20000, scoped, tag = 'input window, operand 0']
    #allocation3 [shape = 's32[2]{0}', space=sflag, size = 0x8, scoped, tag = 'scoped memory for tpu_custom_call.1']
    #allocation4 [shape = 's32[2]{0}', space=sflag, size = 0x8, scoped, tag = 'scoped memory for tpu_custom_call.1']
    #allocation5 [shape = 'u8[131072]{0}', space=vmem, size = 0x20000, scoped, tag = 'output window, operand 0']
    %8 = vsyncpa [#allocation3], 0
    %s9 = scalar_lea.sflag [#allocation3], 1
    %10 = vsyncpa %s9, 0
    %11 = vsyncpa [#allocation4], 0
    %s12 = scalar_lea.sflag [#allocation4], 1
    %13 = vsyncpa %s12, 0
    loop: start=0, step=1, limit=6
    $region2: #{tpu_custom_call.1} parent=1 // loop_pre_header
      _
    $region3: #{tpu_custom_call.1} parent=1 // loop_header
      %s15 = sphi 0, %s19
      %p16 = scmp.ge.s32.totalorder %s15, 6
      %s22 = sphi 0, %s34
      %s23 = sphi 0, %s30
      %s24 = sphi 0, %s22
      %s25 = sphi 0, %s23
      %s26 = sphi 0, %s24
      %s27 = sphi 0, %s25
      %s39 = sphi 0, %s41
      %s42 = sphi 0, %s39
      %s43 = sphi 0, %s42
      %s59 = sphi 0, %s43
      %s65 = sphi 0, %s67
      %s68 = sphi 0, %s65
      %s69 = sphi 0, %s68
      %s85 = sphi 0, %s69
      %s91 = sphi 0, %s93
      %s94 = sphi 0, %s91
      %s95 = sphi 0, %s94
      %s111 = sphi 0, %s95
      %s119 = sphi 0, %s121
      %s122 = sphi 0, %s119
      %s123 = sphi 0, %s122
      %s139 = sphi 0, %s123
    $region4: #{tpu_custom_call.1} parent=1 // loop_header_branch
      %18 = sbr.rel (%p16) target = $region8
    $region5: #{tpu_custom_call.1} parent=1 // loop_body
      %s20 = ssub.s32 %s15, 1
      %s21 = ssub.s32 %s15, 2
      %s28 = sadd.s32 1, %s23
      %p29 = scmp.ge.s32.totalorder %s28, 2
      %s30 = scalar_select %p29, 0, %s28
      %s31 = sadd.s32 1, %s22
      %s32 = scalar_select %p29, %s31, %s22
      %p33 = scmp.ge.s32.totalorder %s32, 2
      %s34 = scalar_select %p33, 0, %s32
      %s35 = ssub.s32 %s23, %s30
      %s36 = ssub.s32 %s22, %s34
      %s37 = sor.u32 %s35, %s36
      %p38 = scmp.eq.s32.totalorder %s37, 0
      %s40 = sadd.s32 %s39, 1
      %s41 = scalar_select %p38, %s39, %s40
      %p44 = pneg %p38
      %p45 = scmp.eq.s32.totalorder %s15, 3
      %p46 = por %p44, %p45
      %p47 = scmp.ne.s32.totalorder %s39, %s42
      %p48 = scmp.eq.s32.totalorder %s15, 0
      %p49 = por %p47, %p48
      %p50 = scmp.ne.s32.totalorder %s39, %s42
      %p51 = scmp.eq.s32.totalorder %s20, 3
      %p52 = por %p50, %p51
      %p53 = scmp.ne.s32.totalorder %s42, %s43
      %p54 = scmp.eq.s32.totalorder %s20, 0
      %p55 = por %p53, %p54
      %p56 = scmp.ne.s32.totalorder %s42, %s43
      %p57 = scmp.eq.s32.totalorder %s21, 3
      %p58 = por %p56, %p57
      %p60 = scmp.ne.s32.totalorder %s43, %s59
      %p61 = scmp.eq.s32.totalorder %s21, 0
      %p62 = por %p60, %p61
      %s63 = ssub.s32 %s22, %s34
      %p64 = scmp.eq.s32.totalorder %s63, 0
      %s66 = sadd.s32 %s65, 1
      %s67 = scalar_select %p64, %s65, %s66
      %p70 = pneg %p64
      %p71 = scmp.eq.s32.totalorder %s15, 3
      %p72 = por %p70, %p71
      %p73 = scmp.ne.s32.totalorder %s65, %s68
      %p74 = scmp.eq.s32.totalorder %s15, 0
      %p75 = por %p73, %p74
      %p76 = scmp.ne.s32.totalorder %s65, %s68
      %p77 = scmp.eq.s32.totalorder %s20, 3
      %p78 = por %p76, %p77
      %p79 = scmp.ne.s32.totalorder %s68, %s69
      %p80 = scmp.eq.s32.totalorder %s20, 0
      %p81 = por %p79, %p80
      %p82 = scmp.ne.s32.totalorder %s68, %s69
      %p83 = scmp.eq.s32.totalorder %s21, 3
      %p84 = por %p82, %p83
      %p86 = scmp.ne.s32.totalorder %s69, %s85
      %p87 = scmp.eq.s32.totalorder %s21, 0
      %p88 = por %p86, %p87
      %s89 = ssub.s32 %s22, %s34
      %p90 = scmp.eq.s32.totalorder %s89, 0
      %s92 = sadd.s32 %s91, 1
      %s93 = scalar_select %p90, %s91, %s92
      %p96 = pneg %p90
      %p97 = scmp.eq.s32.totalorder %s15, 3
      %p98 = por %p96, %p97
      %p99 = scmp.ne.s32.totalorder %s91, %s94
      %p100 = scmp.eq.s32.totalorder %s15, 0
      %p101 = por %p99, %p100
      %p102 = scmp.ne.s32.totalorder %s91, %s94
      %p103 = scmp.eq.s32.totalorder %s20, 3
      %p104 = por %p102, %p103
      %p105 = scmp.ne.s32.totalorder %s94, %s95
      %p106 = scmp.eq.s32.totalorder %s20, 0
      %p107 = por %p105, %p106
      %p108 = scmp.ne.s32.totalorder %s94, %s95
      %p109 = scmp.eq.s32.totalorder %s21, 3
      %p110 = por %p108, %p109
      %p112 = scmp.ne.s32.totalorder %s95, %s111
      %p113 = scmp.eq.s32.totalorder %s21, 0
      %p114 = por %p112, %p113
      %s115 = ssub.s32 %s23, %s30
      %s116 = ssub.s32 %s22, %s34
      %s117 = sor.u32 %s115, %s116
      %p118 = scmp.eq.s32.totalorder %s117, 0
      %s120 = sadd.s32 %s119, 1
      %s121 = scalar_select %p118, %s119, %s120
      %p124 = pneg %p118
      %p125 = scmp.eq.s32.totalorder %s15, 3
      %p126 = por %p124, %p125
      %p127 = scmp.ne.s32.totalorder %s119, %s122
      %p128 = scmp.eq.s32.totalorder %s15, 0
      %p129 = por %p127, %p128
      %p130 = scmp.ne.s32.totalorder %s119, %s122
      %p131 = scmp.eq.s32.totalorder %s20, 3
      %p132 = por %p130, %p131
      %p133 = scmp.ne.s32.totalorder %s122, %s123
      %p134 = scmp.eq.s32.totalorder %s20, 0
      %p135 = por %p133, %p134
      %p136 = scmp.ne.s32.totalorder %s122, %s123
      %p137 = scmp.eq.s32.totalorder %s21, 3
      %p138 = por %p136, %p137
      %p140 = scmp.ne.s32.totalorder %s123, %s139
      %p141 = scmp.eq.s32.totalorder %s21, 0
      %p142 = por %p140, %p141
      %p143 = scmp.le.s32.totalorder 1, %s15
      %p144 = scmp.lt.s32.totalorder %s15, 5
      %p145 = pnand %p143, %p144
      %p146 = pneg %p145
      // Predicated region
      $region9: #{tpu_custom_call.1} parent=5 // pred_check
        _
      $region10: #{tpu_custom_call.1} parent=5 // pred_check_branch
        %148 = sbr.rel (%p145) target = $region12
      $region11: #{tpu_custom_call.1} parent=5 // pred_region
        %s149 = ssub.s32 %s15, 1
      $region12: #{tpu_custom_call.1} parent=5 // pred_fallthru
        _
      %p150 = scmp.lt.s32.totalorder %s15, 4
      // Predicated region
      $region13: #{tpu_custom_call.1} parent=5 // pred_check
        %p151 = pneg %p150
      $region14: #{tpu_custom_call.1} parent=5 // pred_check_branch
        %153 = sbr.rel (%p151) target = $region16
      $region15: #{tpu_custom_call.1} parent=5 // pred_region
        // Predicated region
        $region17: #{tpu_custom_call.1} parent=15 // pred_check
          %p154 = pneg %p49
        $region18: #{tpu_custom_call.1} parent=15 // pred_check_branch
          %156 = sbr.rel (%p154) target = $region20
        $region19: #{tpu_custom_call.1} parent=15 // pred_region
          %s157 = sand.u32 %s39, 1
          %s158 = scalar_lea.sflag [#allocation3], %s157
          %s159 = sand.u32 %s39, 1
          %s160 = smul.addr %s159, 128
          %s161 = scalar_lea.vmem [#allocation2], %s160
          %s162 = smul.u32 16, %s22
          %s164 = ssub.s32 2048, 2048
          %165 = vsyncadd %s158, %s164
          %s166 = smul.addr %s23, 32
          %s167 = sadd.s32 %s162, %s166
          %s168 = smul.addr %s167, 128
          %s169 = scalar_lea.hbm %s0, %s168
          %s170 = sshll.u32 %s161, 4
          %s171 = int_to_ptr.vmem [resolvable:$true] %s170
          %176 = dma.hbm_to_vmem [thread:$0]  %s169, 2048, %s171, %s158, 128, 128, 8
        $region20: #{tpu_custom_call.1} parent=15 // pred_fallthru
          _
        // Predicated region
        $region21: #{tpu_custom_call.1} parent=15 // pred_check
          %p177 = pneg %p75
        $region22: #{tpu_custom_call.1} parent=15 // pred_check_branch
          %179 = sbr.rel (%p177) target = $region24
        $region23: #{tpu_custom_call.1} parent=15 // pred_region
          %s180 = smul.u32 16, %s22
          %p181 = scmp.lt.s32.totalorder %s180, 31
          %s182 = scalar_select %p181, %s180, 31
          %s183 = smul.addr %s182, 8
          %s184 = scalar_lea.vmem %s1, %s183
          %s185 = smul.u32 16, %s22
        $region24: #{tpu_custom_call.1} parent=15 // pred_fallthru
          _
        // Predicated region
        $region25: #{tpu_custom_call.1} parent=15 // pred_check
          %p186 = pneg %p101
        $region26: #{tpu_custom_call.1} parent=15 // pred_check_branch
          %188 = sbr.rel (%p186) target = $region28
        $region27: #{tpu_custom_call.1} parent=15 // pred_region
          %s189 = smul.u32 16, %s22
          %p190 = scmp.lt.s32.totalorder %s189, 31
          %s191 = scalar_select %p190, %s189, 31
          %s192 = smul.addr %s191, 8
          %s193 = scalar_lea.vmem %s2, %s192
          %s194 = smul.u32 16, %s22
        $region28: #{tpu_custom_call.1} parent=15 // pred_fallthru
          _
      $region16: #{tpu_custom_call.1} parent=5 // pred_fallthru
        _
      %p195 = scmp.le.s32.totalorder 1, %s15
      %p196 = scmp.lt.s32.totalorder %s15, 5
      %p197 = pnand %p195, %p196
      %p198 = pneg %p197
      // Predicated region
      $region29: #{tpu_custom_call.1} parent=5 // pred_check
        _
      $region30: #{tpu_custom_call.1} parent=5 // pred_check_branch
        %200 = sbr.rel (%p197) target = $region32
      $region31: #{tpu_custom_call.1} parent=5 // pred_region
        %s201 = ssub.s32 %s15, 1
        %s202 = sand.u32 %s42, 1
        %s203 = scalar_lea.sflag [#allocation3], %s202
        %s204 = sand.u32 %s42, 1
        %s205 = smul.addr %s204, 128
        %s206 = scalar_lea.vmem [#allocation2], %s205
        // Predicated region
        $region33: #{tpu_custom_call.1} parent=31 // pred_check
          %p207 = pneg %p55
        $region34: #{tpu_custom_call.1} parent=31 // pred_check_branch
          %209 = sbr.rel (%p207) target = $region36
        $region35: #{tpu_custom_call.1} parent=31 // pred_region
          %210 = dma.done %s203, 2048
        $region36: #{tpu_custom_call.1} parent=31 // pred_fallthru
          _
        %s211 = sand.u32 %s42, 1
        %s212 = scalar_lea.sflag [#allocation3], %s211
        %s213 = sand.u32 %s42, 1
        %s214 = smul.addr %s213, 128
        %s215 = scalar_lea.vmem [#allocation2], %s214
        %p216 = pneg %p55
        %p217 = pneg %p52
        %s218 = smul.u32 16, %s24
        %p219 = scmp.lt.s32.totalorder %s218, 31
        %s220 = scalar_select %p219, %s218, 31
        %s221 = smul.addr %s220, 8
        %s222 = scalar_lea.vmem %s1, %s221
        %p223 = pneg %p81
        %p224 = pneg %p78
        %s225 = smul.u32 16, %s24
        %p226 = scmp.lt.s32.totalorder %s225, 31
        %s227 = scalar_select %p226, %s225, 31
        %s228 = smul.addr %s227, 8
        %s229 = scalar_lea.vmem %s2, %s228
        %p230 = pneg %p107
        %p231 = pneg %p104
        %p232 = pneg %p135
        %p233 = pneg %p132
        %s234 = sand.u32 %s122, 1
        %s235 = scalar_lea.sflag [#allocation4], %s234
        %s236 = sand.u32 %s122, 1
        %s237 = smul.addr %s236, 128
        %s238 = scalar_lea.vmem [#allocation5], %s237
        %s239 = smul.u32 16, %s24
        %s240 = smul.u32 16, %s24
        %p241 = scmp.lt.s32.totalorder %s240, 31
        %s242 = scalar_select %p241, %s240, 31
        %s243 = smul.addr %s242, 8
        %s244 = scalar_lea.vmem %s1, %s243
        %s245 = smul.u32 16, %s24
        %s246 = smul.u32 16, %s24
        %p247 = scmp.lt.s32.totalorder %s246, 31
        %s248 = scalar_select %p247, %s246, 31
        %s249 = smul.addr %s248, 8
        %s250 = scalar_lea.vmem %s2, %s249
        %s251 = smul.u32 16, %s24
        %s252 = smul.u32 16, %s24
        %v253 = vld [vmem:[%s206] sm:$0xff]
        %v254 = vld [vmem:[%s206 + $0x8] sm:$0xff]
        %v255 = vld [vmem:[%s206 + $0x10] sm:$0xff]
        %v256 = vld [vmem:[%s206 + $0x18] sm:$0xff]
        %v257 = vld [vmem:[%s206 + $0x20] sm:$0xff]
        %v258 = vld [vmem:[%s206 + $0x28] sm:$0xff]
        %v259 = vld [vmem:[%s206 + $0x30] sm:$0xff]
        %v260 = vld [vmem:[%s206 + $0x38] sm:$0xff]
        %v261 = vld [vmem:[%s206 + $0x40] sm:$0xff]
        %v262 = vld [vmem:[%s206 + $0x48] sm:$0xff]
        %v263 = vld [vmem:[%s206 + $0x50] sm:$0xff]
        %v264 = vld [vmem:[%s206 + $0x58] sm:$0xff]
        %v265 = vld [vmem:[%s206 + $0x60] sm:$0xff]
        %v266 = vld [vmem:[%s206 + $0x68] sm:$0xff]
        %v267 = vld [vmem:[%s206 + $0x70] sm:$0xff]
        %v268 = vld [vmem:[%s206 + $0x78] sm:$0xff]
        %269 = vrot.lane.b32.xlu0 %v253, 127
        %v270 = vpop.permute.xlu0 %269
        %271 = vrot.lane.b32.xlu0 %v254, 127
        %v272 = vpop.permute.xlu0 %271
        %273 = vrot.lane.b32.xlu0 %v255, 127
        %v274 = vpop.permute.xlu0 %273
        %275 = vrot.lane.b32.xlu0 %v256, 127
        %v276 = vpop.permute.xlu0 %275
        %277 = vrot.lane.b32.xlu0 %v257, 127
        %v278 = vpop.permute.xlu0 %277
        %279 = vrot.lane.b32.xlu0 %v258, 127
        %v280 = vpop.permute.xlu0 %279
        %281 = vrot.lane.b32.xlu0 %v259, 127
        %v282 = vpop.permute.xlu0 %281
        %283 = vrot.lane.b32.xlu0 %v260, 127
        %v284 = vpop.permute.xlu0 %283
        %285 = vrot.lane.b32.xlu0 %v261, 127
        %v286 = vpop.permute.xlu0 %285
        %287 = vrot.lane.b32.xlu0 %v262, 127
        %v288 = vpop.permute.xlu0 %287
        %289 = vrot.lane.b32.xlu0 %v263, 127
        %v290 = vpop.permute.xlu0 %289
        %291 = vrot.lane.b32.xlu0 %v264, 127
        %v292 = vpop.permute.xlu0 %291
        %293 = vrot.lane.b32.xlu0 %v265, 127
        %v294 = vpop.permute.xlu0 %293
        %295 = vrot.lane.b32.xlu0 %v266, 127
        %v296 = vpop.permute.xlu0 %295
        %297 = vrot.lane.b32.xlu0 %v267, 127
        %v298 = vpop.permute.xlu0 %297
        %299 = vrot.lane.b32.xlu0 %v268, 127
        %v300 = vpop.permute.xlu0 %299
        %301 = vrot.lane.b32.xlu0 %v253, 1
        %v302 = vpop.permute.xlu0 %301
        %303 = vrot.lane.b32.xlu0 %v254, 1
        %v304 = vpop.permute.xlu0 %303
        %305 = vrot.lane.b32.xlu0 %v255, 1
        %v306 = vpop.permute.xlu0 %305
        %307 = vrot.lane.b32.xlu0 %v256, 1
        %v308 = vpop.permute.xlu0 %307
        %309 = vrot.lane.b32.xlu0 %v257, 1
        %v310 = vpop.permute.xlu0 %309
        %311 = vrot.lane.b32.xlu0 %v258, 1
        %v312 = vpop.permute.xlu0 %311
        %313 = vrot.lane.b32.xlu0 %v259, 1
        %v314 = vpop.permute.xlu0 %313
        %315 = vrot.lane.b32.xlu0 %v260, 1
        %v316 = vpop.permute.xlu0 %315
        %317 = vrot.lane.b32.xlu0 %v261, 1
        %v318 = vpop.permute.xlu0 %317
        %319 = vrot.lane.b32.xlu0 %v262, 1
        %v320 = vpop.permute.xlu0 %319
        %321 = vrot.lane.b32.xlu0 %v263, 1
        %v322 = vpop.permute.xlu0 %321
        %323 = vrot.lane.b32.xlu0 %v264, 1
        %v324 = vpop.permute.xlu0 %323
        %325 = vrot.lane.b32.xlu0 %v265, 1
        %v326 = vpop.permute.xlu0 %325
        %327 = vrot.lane.b32.xlu0 %v266, 1
        %v328 = vpop.permute.xlu0 %327
        %329 = vrot.lane.b32.xlu0 %v267, 1
        %v330 = vpop.permute.xlu0 %329
        %331 = vrot.lane.b32.xlu0 %v268, 1
        %v332 = vpop.permute.xlu0 %331
        %v333 = vlaneseq
        %v334 = vand.u32 %v333, 127
        %v335 = vand.u32 %v334, 1
        %vm336 = vcmp.eq.s32.totalorder %v335, 0
        %v337 = vsel %vm336, %v270, %v302
        %v338 = vsel %vm336, %v272, %v304
        %v339 = vsel %vm336, %v274, %v306
        %v340 = vsel %vm336, %v276, %v308
        %v341 = vsel %vm336, %v278, %v310
        %v342 = vsel %vm336, %v280, %v312
        %v343 = vsel %vm336, %v282, %v314
        %v344 = vsel %vm336, %v284, %v316
        %v345 = vsel %vm336, %v286, %v318
        %v346 = vsel %vm336, %v288, %v320
        %v347 = vsel %vm336, %v290, %v322
        %v348 = vsel %vm336, %v292, %v324
        %v349 = vsel %vm336, %v294, %v326
        %v350 = vsel %vm336, %v296, %v328
        %v351 = vsel %vm336, %v298, %v330
        %v352 = vsel %vm336, %v300, %v332
        %v353 = vld [vmem:[%s244] sm:$0xff]
        %v354 = vld [vmem:[%s244 + $0x8] sm:$0xff]
        %v355 = vld [vmem:[%s244 + $0x10] sm:$0xff]
        %v356 = vld [vmem:[%s244 + $0x18] sm:$0xff]
        %v357 = vld [vmem:[%s244 + $0x20] sm:$0xff]
        %v358 = vld [vmem:[%s244 + $0x28] sm:$0xff]
        %v359 = vld [vmem:[%s244 + $0x30] sm:$0xff]
        %v360 = vld [vmem:[%s244 + $0x38] sm:$0xff]
        %v361 = vld [vmem:[%s244 + $0x40] sm:$0xff]
        %v362 = vld [vmem:[%s244 + $0x48] sm:$0xff]
        %v363 = vld [vmem:[%s244 + $0x50] sm:$0xff]
        %v364 = vld [vmem:[%s244 + $0x58] sm:$0xff]
        %v365 = vld [vmem:[%s244 + $0x60] sm:$0xff]
        %v366 = vld [vmem:[%s244 + $0x68] sm:$0xff]
        %v367 = vld [vmem:[%s244 + $0x70] sm:$0xff]
        %v368 = vld [vmem:[%s244 + $0x78] sm:$0xff]
        %v369 = vmul.f32 %v253, %v353
        %v370 = vmul.f32 %v254, %v354
        %v371 = vmul.f32 %v255, %v355
        %v372 = vmul.f32 %v256, %v356
        %v373 = vmul.f32 %v257, %v357
        %v374 = vmul.f32 %v258, %v358
        %v375 = vmul.f32 %v259, %v359
        %v376 = vmul.f32 %v260, %v360
        %v377 = vmul.f32 %v261, %v361
        %v378 = vmul.f32 %v262, %v362
        %v379 = vmul.f32 %v263, %v363
        %v380 = vmul.f32 %v264, %v364
        %v381 = vmul.f32 %v265, %v365
        %v382 = vmul.f32 %v266, %v366
        %v383 = vmul.f32 %v267, %v367
        %v384 = vmul.f32 %v268, %v368
        %v385 = vld [vmem:[%s250] sm:$0xff]
        %v386 = vld [vmem:[%s250 + $0x8] sm:$0xff]
        %v387 = vld [vmem:[%s250 + $0x10] sm:$0xff]
        %v388 = vld [vmem:[%s250 + $0x18] sm:$0xff]
        %v389 = vld [vmem:[%s250 + $0x20] sm:$0xff]
        %v390 = vld [vmem:[%s250 + $0x28] sm:$0xff]
        %v391 = vld [vmem:[%s250 + $0x30] sm:$0xff]
        %v392 = vld [vmem:[%s250 + $0x38] sm:$0xff]
        %v393 = vld [vmem:[%s250 + $0x40] sm:$0xff]
        %v394 = vld [vmem:[%s250 + $0x48] sm:$0xff]
        %v395 = vld [vmem:[%s250 + $0x50] sm:$0xff]
        %v396 = vld [vmem:[%s250 + $0x58] sm:$0xff]
        %v397 = vld [vmem:[%s250 + $0x60] sm:$0xff]
        %v398 = vld [vmem:[%s250 + $0x68] sm:$0xff]
        %v399 = vld [vmem:[%s250 + $0x70] sm:$0xff]
        %v400 = vld [vmem:[%s250 + $0x78] sm:$0xff]
        %v401 = vmul.f32 %v337, %v385
        %v402 = vmul.f32 %v338, %v386
        %v403 = vmul.f32 %v339, %v387
        %v404 = vmul.f32 %v340, %v388
        %v405 = vmul.f32 %v341, %v389
        %v406 = vmul.f32 %v342, %v390
        %v407 = vmul.f32 %v343, %v391
        %v408 = vmul.f32 %v344, %v392
        %v409 = vmul.f32 %v345, %v393
        %v410 = vmul.f32 %v346, %v394
        %v411 = vmul.f32 %v347, %v395
        %v412 = vmul.f32 %v348, %v396
        %v413 = vmul.f32 %v349, %v397
        %v414 = vmul.f32 %v350, %v398
        %v415 = vmul.f32 %v351, %v399
        %v416 = vmul.f32 %v352, %v400
        %v417 = vadd.f32 %v369, %v401
        %v418 = vadd.f32 %v370, %v402
        %v419 = vadd.f32 %v371, %v403
        %v420 = vadd.f32 %v372, %v404
        %v421 = vadd.f32 %v373, %v405
        %v422 = vadd.f32 %v374, %v406
        %v423 = vadd.f32 %v375, %v407
        %v424 = vadd.f32 %v376, %v408
        %v425 = vadd.f32 %v377, %v409
        %v426 = vadd.f32 %v378, %v410
        %v427 = vadd.f32 %v379, %v411
        %v428 = vadd.f32 %v380, %v412
        %v429 = vadd.f32 %v381, %v413
        %v430 = vadd.f32 %v382, %v414
        %v431 = vadd.f32 %v383, %v415
        %v432 = vadd.f32 %v384, %v416
        %433 = vst [vmem:[%s238] sm:$0xff] %v417
        %434 = vst [vmem:[%s238 + $0x8] sm:$0xff] %v418
        %435 = vst [vmem:[%s238 + $0x10] sm:$0xff] %v419
        %436 = vst [vmem:[%s238 + $0x18] sm:$0xff] %v420
        %437 = vst [vmem:[%s238 + $0x20] sm:$0xff] %v421
        %438 = vst [vmem:[%s238 + $0x28] sm:$0xff] %v422
        %439 = vst [vmem:[%s238 + $0x30] sm:$0xff] %v423
        %440 = vst [vmem:[%s238 + $0x38] sm:$0xff] %v424
        %441 = vst [vmem:[%s238 + $0x40] sm:$0xff] %v425
        %442 = vst [vmem:[%s238 + $0x48] sm:$0xff] %v426
        %443 = vst [vmem:[%s238 + $0x50] sm:$0xff] %v427
        %444 = vst [vmem:[%s238 + $0x58] sm:$0xff] %v428
        %445 = vst [vmem:[%s238 + $0x60] sm:$0xff] %v429
        %446 = vst [vmem:[%s238 + $0x68] sm:$0xff] %v430
        %447 = vst [vmem:[%s238 + $0x70] sm:$0xff] %v431
        %448 = vst [vmem:[%s238 + $0x78] sm:$0xff] %v432
        %s449 = sand.u32 %s122, 1
        %s450 = scalar_lea.sflag [#allocation4], %s449
        %s451 = sand.u32 %s122, 1
        %s452 = smul.addr %s451, 128
        %s453 = scalar_lea.vmem [#allocation5], %s452
        // Predicated region
        $region37: #{tpu_custom_call.1} parent=31 // pred_check
          %p454 = pneg %p132
        $region38: #{tpu_custom_call.1} parent=31 // pred_check_branch
          %456 = sbr.rel (%p454) target = $region40
        $region39: #{tpu_custom_call.1} parent=31 // pred_region
          %s457 = smul.u32 16, %s24
          %s459 = ssub.s32 2048, 2048
          %460 = vsyncadd %s450, %s459
          %s461 = smul.addr %s25, 32
          %s462 = sadd.s32 %s457, %s461
          %s463 = smul.addr %s462, 128
          %s464 = scalar_lea.hbm %s3, %s463
          %s465 = sshll.u32 %s453, 4
          %s466 = int_to_ptr.vmem [resolvable:$true] %s465
          %471 = dma.vmem_to_hbm [thread:$0]  %s466, 2048, %s464, %s450, 128, 128, 8
        $region40: #{tpu_custom_call.1} parent=31 // pred_fallthru
          _
      $region32: #{tpu_custom_call.1} parent=5 // pred_fallthru
        _
      %p472 = scmp.le.s32.totalorder 2, %s15
      // Predicated region
      $region41: #{tpu_custom_call.1} parent=5 // pred_check
        %p473 = pneg %p472
      $region42: #{tpu_custom_call.1} parent=5 // pred_check_branch
        %475 = sbr.rel (%p473) target = $region44
      $region43: #{tpu_custom_call.1} parent=5 // pred_region
        %s476 = ssub.s32 %s15, 2
        // Predicated region
        $region45: #{tpu_custom_call.1} parent=43 // pred_check
          %p477 = pneg %p138
        $region46: #{tpu_custom_call.1} parent=43 // pred_check_branch
          %479 = sbr.rel (%p477) target = $region48
        $region47: #{tpu_custom_call.1} parent=43 // pred_region
          %s480 = sand.u32 %s123, 1
          %s481 = scalar_lea.sflag [#allocation4], %s480
          %s482 = sand.u32 %s123, 1
          %s483 = smul.addr %s482, 128
          %s484 = scalar_lea.vmem [#allocation5], %s483
          %485 = dma.done %s481, 2048
        $region48: #{tpu_custom_call.1} parent=43 // pred_fallthru
          _
      $region44: #{tpu_custom_call.1} parent=5 // pred_fallthru
        _
    $region6: #{tpu_custom_call.1} parent=1 // loop_footer
      %s19 = sadd.s32 1, %s15
    $region7: #{tpu_custom_call.1} parent=1 // loop_footer_branch
      %14 = sbr.rel target = $region3
    $region8: #{tpu_custom_call.1} parent=1 // loop_exit
      _
    %486 = vsyncpa [#allocation3], 1
    %s487 = scalar_lea.sflag [#allocation3], 1
    %488 = vsyncpa %s487, 1
    %489 = vsyncpa [#allocation4], 1
    %s490 = scalar_lea.sflag [#allocation4], 1
    %491 = vsyncpa %s490, 1

</llo_original>
